<compile_context>
chip_gen: v6e
topology: v6e:2x2x1
jax: 0.10.0
libtpu: 0.0.40
codegen_flags: <defaults>
</compile_context>

<pallas_src>
import jax
import jax.numpy as jnp
from jax.experimental import pallas as pl
from jax.experimental.pallas import tpu as pltpu

EPS = 1e-5
MOMENTUM = 0.9

_TARGET_BLOCK_BYTES = 2 << 20          # ~2 MiB x-block (double-buffered by Pallas)
_VMEM_LIMIT_BYTES = 32 * 1024 * 1024   # safe on v5e/v6e (128 MiB) and v7x (64 MiB)


def _pick_tile(dim, align, max_tile):
    """Largest multiple of `align` that divides `dim` and is <= max_tile.

    Falls back to the full dim when `dim` is not a multiple of `align`
    (a block equal to the full array dim is always legal).
    """
    if dim % align != 0:
        return dim
    best = align
    k = 1
    while k * align <= min(dim, max_tile):
        if dim % (k * align) == 0:
            best = k * align
        k += 1
    return best


def _pick_divisor(n, max_val):
    """Largest divisor of `n` that is <= max_val (at least 1)."""
    best = 1
    for d in range(1, max(1, min(n, max_val)) + 1):
        if n % d == 0:
            best = d
    return best


def _bn_stats_kernel(x_ref, sum_ref, sumsq_ref):
    """Pass 1: accumulate per-channel sum and sum-of-squares over (N, HW) tiles."""
    n = pl.program_id(1)
    m = pl.program_id(2)

    @pl.when(jnp.logical_and(n == 0, m == 0))
    def _():
        sum_ref[...] = jnp.zeros_like(sum_ref)
        sumsq_ref[...] = jnp.zeros_like(sumsq_ref)

    x = x_ref[...].astype(jnp.float32)                       # (TN, TC, TM)
    xs = jnp.sum(x, axis=0)                                  # (TC, TM)
    x2s = jnp.sum(x * x, axis=0)                             # (TC, TM)
    # Streaming fp32 sum / sumsq accumulation (VMEM-resident output block
    # across the two reduction axes).
    sum_ref[...] += jnp.sum(xs, axis=1, keepdims=True)       # (TC, 1)
    sumsq_ref[...] += jnp.sum(x2s, axis=1, keepdims=True)    # (TC, 1)


def _bn_norm_kernel(x_ref, scale_ref, shift_ref, y_ref):
    """Pass 2: y = x * scale + shift with per-channel folded affine."""
    x = x_ref[...].astype(jnp.float32)                       # (TN, TC, TM)
    scale = scale_ref[...][None, :, :]                       # (1, TC, 1)
    shift = shift_ref[...][None, :, :]                       # (1, TC, 1)
    y_ref[...] = (x * scale + shift).astype(y_ref.dtype)


def batch_norm_pallas(x_nchw, gamma, beta, moving_mean, moving_var,
                      eps=EPS, momentum=MOMENTUM):
    """Training-mode BatchNorm forward for 4D NCHW input.

    gamma, beta, moving_mean, moving_var have shape (1, C, 1, 1).
    Returns (Y_nchw, new_moving_mean, new_moving_var).
    """
    N, C, H, W = x_nchw.shape
    HW = H * W
    count = N * HW

    # Free reshape (no data movement / transpose): NCHW -> (N, C, HW).
    x3 = x_nchw.reshape(N, C, HW)

    itemsize = jnp.dtype(x_nchw.dtype).itemsize
    tc = _pick_tile(C, 8, 8)                                   # sublane-aligned channel tile
    tm_budget = max(128, _TARGET_BLOCK_BYTES // (itemsize * tc))
    tm_budget = max(128, (tm_budget // 128) * 128)
    tm = _pick_tile(HW, 128, tm_budget)                        # lane-dense spatial tile
    tn = _pick_divisor(N, max(1, _TARGET_BLOCK_BYTES // (itemsize * tc * tm)))

    grid = (C // tc, N // tn, HW // tm)

    x_spec = pl.BlockSpec((tn, tc, tm), lambda c, n, m: (n, c, m))
    vec_spec = pl.BlockSpec((tc, 1), lambda c, n, m: (c, 0))

    # ---------------- pass 1: per-channel sum / sum-of-squares ----------------
    sum_c, sumsq_c = pl.pallas_call(
        _bn_stats_kernel,
        out_shape=(jax.ShapeDtypeStruct((C, 1), jnp.float32),
                   jax.ShapeDtypeStruct((C, 1), jnp.float32)),
        grid_spec=pltpu.PrefetchScalarGridSpec(
            num_scalar_prefetch=0,
            grid=grid,
            in_specs=[x_spec],
            out_specs=[vec_spec, vec_spec],
        ),
        compiler_params=pltpu.CompilerParams(
            dimension_semantics=("parallel", "arbitrary", "arbitrary"),
            vmem_limit_bytes=_VMEM_LIMIT_BYTES),
    )(x3)

    # Tiny (C,)-sized math done once in the wrapper: batch stats, folded affine,
    # and the moving-stat update (negligible vs. streaming x twice).
    inv_count = 1.0 / float(count)
    mean = sum_c * inv_count                                      # (C, 1)
    var = jnp.maximum(sumsq_c * inv_count - mean * mean, 0.0)     # biased var
    inv_std = jax.lax.rsqrt(var + eps)
    g = gamma.reshape(C, 1).astype(jnp.float32)
    b = beta.reshape(C, 1).astype(jnp.float32)
    scale = g * inv_std                                           # (C, 1)
    shift = b - mean * scale                                      # (C, 1)

    # ---------------- pass 2: normalize ---------------------------------------
    y3 = pl.pallas_call(
        _bn_norm_kernel,
        out_shape=jax.ShapeDtypeStruct((N, C, HW), x_nchw.dtype),
        grid_spec=pltpu.PrefetchScalarGridSpec(
            num_scalar_prefetch=0,
            grid=grid,
            in_specs=[x_spec, vec_spec, vec_spec],
            out_specs=x_spec,
        ),
        compiler_params=pltpu.CompilerParams(
            dimension_semantics=("parallel", "parallel", "parallel"),
            vmem_limit_bytes=_VMEM_LIMIT_BYTES),
    )(x3, scale, shift)

    y = y3.reshape(N, C, H, W)                     # free reshape back to NCHW
    new_mm = momentum * moving_mean + (1.0 - momentum) * mean.reshape(1, C, 1, 1)
    new_mv = momentum * moving_var + (1.0 - momentum) * var.reshape(1, C, 1, 1)
    return y, new_mm, new_mv


def batch_norm_ref(x, gamma, beta, moving_mean, moving_var,
                   eps=EPS, momentum=MOMENTUM):
    mean = x.mean(axis=(0, 2, 3), keepdims=True)
    var = ((x - mean) ** 2).mean(axis=(0, 2, 3), keepdims=True)
    x_hat = (x - mean) / jnp.sqrt(var + eps)
    y = gamma * x_hat + beta
    new_mm = momentum * moving_mean + (1.0 - momentum) * mean
    new_mv = momentum * moving_var + (1.0 - momentum) * var
    return y, new_mm, new_mv


if __name__ == "__main__":
    key = jax.random.PRNGKey(0)
    N, C, H, W = 2, 4, 16, 16

    x = jax.random.normal(key, (N, C, H, W), dtype=jnp.float32)

    # BatchNorm(num_features=C, num_dims=4) parameter init
    gamma = jnp.ones((1, C, 1, 1), dtype=jnp.float32)
    beta = jnp.zeros((1, C, 1, 1), dtype=jnp.float32)
    moving_mean = jnp.zeros((1, C, 1, 1), dtype=jnp.float32)
    moving_var = jnp.ones((1, C, 1, 1), dtype=jnp.float32)

    y, new_mm, new_mv = batch_norm_pallas(x, gamma, beta, moving_mean, moving_var)
    jax.block_until_ready((y, new_mm, new_mv))

    y_ref, mm_ref, mv_ref = batch_norm_ref(x, gamma, beta, moving_mean, moving_var)
    assert jnp.allclose(y, y_ref, atol=1e-4, rtol=1e-4)
    assert jnp.allclose(new_mm, mm_ref, atol=1e-5, rtol=1e-5)
    assert jnp.allclose(new_mv, mv_ref, atol=1e-5, rtol=1e-5)

    print("KERNEL_OK")
</pallas_src>

<mosaic_0001>
module attributes {stable_mosaic.version = 11 : i64} {
  func.func @_bn_stats_kernel(%arg0: i32, %arg1: i32, %arg2: i32, %arg3: memref<2x4x256xf32, #tpu.memory_space<vmem>>, %arg4: memref<4x1xf32, #tpu.memory_space<vmem>>, %arg5: memref<4x1xf32, #tpu.memory_space<vmem>>) attributes {dimension_semantics = [#tpu.dimension_semantics<parallel>, #tpu.dimension_semantics<arbitrary>, #tpu.dimension_semantics<arbitrary>], iteration_bounds = array<i64: 1, 1, 1>, scalar_prefetch = 0 : i64, scratch_operands = 0 : i64, tpu.core_type = #tpu.core_type<tc>, window_params = [{transform_indices = @transform_0, window_bounds = array<i64: 2, 4, 256>}, {transform_indices = @transform_1, window_bounds = array<i64: 4, 1>}, {transform_indices = @transform_2, window_bounds = array<i64: 4, 1>}]} {
    %c0_i32 = arith.constant 0 : i32
    %0 = arith.cmpi eq, %arg1, %c0_i32 : i32
    %c0_i32_0 = arith.constant 0 : i32
    %1 = arith.cmpi eq, %arg2, %c0_i32_0 : i32
    %2 = arith.andi %0, %1 : i1
    %3 = arith.extui %2 : i1 to i32
    %c0_i32_1 = arith.constant 0 : i32
    %4 = arith.cmpi ne, %3, %c0_i32_1 : i32
    scf.if %4 {
      %cst_15 = arith.constant 0.000000e+00 : f32
      %19 = vector.broadcast %cst_15 : f32 to vector<4x1xf32>
      %c0_16 = arith.constant 0 : index
      %c0_17 = arith.constant 0 : index
      %20 = vector.load %arg4[%c0_16, %c0_17] : memref<4x1xf32, #tpu.memory_space<vmem>>, vector<4x1xf32>
      tpu.vector_store %arg4[%c0_16, %c0_17], %19 {strides = array<i32>} : memref<4x1xf32, #tpu.memory_space<vmem>>, vector<4x1xf32>,
      %cst_18 = arith.constant 0.000000e+00 : f32
      %21 = vector.broadcast %cst_18 : f32 to vector<4x1xf32>
      %c0_19 = arith.constant 0 : index
      %c0_20 = arith.constant 0 : index
      %22 = vector.load %arg5[%c0_19, %c0_20] : memref<4x1xf32, #tpu.memory_space<vmem>>, vector<4x1xf32>
      tpu.vector_store %arg5[%c0_19, %c0_20], %21 {strides = array<i32>} : memref<4x1xf32, #tpu.memory_space<vmem>>, vector<4x1xf32>,
    } else {
    }
    %c0 = arith.constant 0 : index
    %c0_2 = arith.constant 0 : index
    %c0_3 = arith.constant 0 : index
    %5 = vector.load %arg3[%c0, %c0_2, %c0_3] : memref<2x4x256xf32, #tpu.memory_space<vmem>>, vector<2x4x256xf32>
    %cst = arith.constant dense<0.000000e+00> : vector<4x256xf32>
    %6 = vector.multi_reduction <add>, %5, %cst [0] : vector<2x4x256xf32> to vector<4x256xf32>
    %7 = arith.mulf %5, %5 : vector<2x4x256xf32>
    %cst_4 = arith.constant dense<0.000000e+00> : vector<4x256xf32>
    %8 = vector.multi_reduction <add>, %7, %cst_4 [0] : vector<2x4x256xf32> to vector<4x256xf32>
    %c0_5 = arith.constant 0 : index
    %c0_6 = arith.constant 0 : index
    %9 = vector.load %arg4[%c0_5, %c0_6] : memref<4x1xf32, #tpu.memory_space<vmem>>, vector<4x1xf32>
    %cst_7 = arith.constant dense<0.000000e+00> : vector<4xf32>
    %10 = vector.multi_reduction <add>, %6, %cst_7 [1] : vector<4x256xf32> to vector<4xf32>
    %11 = vector.shape_cast %10 : vector<4xf32> to vector<4x1xf32>
    %12 = arith.addf %9, %11 : vector<4x1xf32>
    %c0_8 = arith.constant 0 : index
    %c0_9 = arith.constant 0 : index
    %13 = vector.load %arg4[%c0_8, %c0_9] : memref<4x1xf32, #tpu.memory_space<vmem>>, vector<4x1xf32>
    tpu.vector_store %arg4[%c0_8, %c0_9], %12 {strides = array<i32>} : memref<4x1xf32, #tpu.memory_space<vmem>>, vector<4x1xf32>,
    %c0_10 = arith.constant 0 : index
    %c0_11 = arith.constant 0 : index
    %14 = vector.load %arg5[%c0_10, %c0_11] : memref<4x1xf32, #tpu.memory_space<vmem>>, vector<4x1xf32>
    %cst_12 = arith.constant dense<0.000000e+00> : vector<4xf32>
    %15 = vector.multi_reduction <add>, %8, %cst_12 [1] : vector<4x256xf32> to vector<4xf32>
    %16 = vector.shape_cast %15 : vector<4xf32> to vector<4x1xf32>
    %17 = arith.addf %14, %16 : vector<4x1xf32>
    %c0_13 = arith.constant 0 : index
    %c0_14 = arith.constant 0 : index
    %18 = vector.load %arg5[%c0_13, %c0_14] : memref<4x1xf32, #tpu.memory_space<vmem>>, vector<4x1xf32>
    tpu.vector_store %arg5[%c0_13, %c0_14], %17 {strides = array<i32>} : memref<4x1xf32, #tpu.memory_space<vmem>>, vector<4x1xf32>,
    return
  }
  func.func @transform_0(%arg0: i32, %arg1: i32, %arg2: i32) -> (i32, i32, i32) {
    %c0_i32 = arith.constant 0 : i32
    return %arg1, %arg0, %arg2 : i32, i32, i32
  }
  func.func @transform_1(%arg0: i32, %arg1: i32, %arg2: i32) -> (i32, i32) {
    %c0_i32 = arith.constant 0 : i32
    %c0_i32_0 = arith.constant 0 : i32
    return %arg0, %c0_i32 : i32, i32
  }
  func.func @transform_2(%arg0: i32, %arg1: i32, %arg2: i32) -> (i32, i32) {
    %c0_i32 = arith.constant 0 : i32
    %c0_i32_0 = arith.constant 0 : i32
    return %arg0, %c0_i32 : i32, i32
  }
}

</mosaic_0001>

<llo_original>
// kernel: tpu_custom_call.1
$region0: #{tpu_custom_call.1}
  #allocation0 [shape = 'u32[]', space=smem, size = 0x4, offset = 0x4, fixed_abs, tag = 'smem constant byte address 0x4 - core index']
  #allocation1 [shape = 'u32[144,128]{1,0:T(1,128)}', space=vmem, size = 0x12000, scoped, tag = 'internal scratch']
  %s0 = inlined_call_operand.hbm [shape: f32[2,4,256], index: 0, kind: input, shape index: {}]
  %s1 = inlined_call_operand.vmem [shape: f32[4,1], index: 1, kind: output, shape index: {0}]
  %s2 = inlined_call_operand.vmem [shape: f32[4,1], index: 2, kind: output, shape index: {1}]
  %3 = xla_tuple %s1, %s2
  %s4 = sld [smem:[#allocation0]]
  $region30: #{tpu_custom_call.1} parent=0
    _
  %s6 = ssub.s32 1, %s4
  %s7 = scalar_select 0, %s6, %s4
  $region1: #{tpu_custom_call.1} parent=0
    #allocation2 [shape = 'u8[8192]{0}', space=vmem, size = 0x2000, scoped, tag = 'input window, operand 0, single buffered']
    #allocation3 [shape = 's32[1]{0}', space=sflag, size = 0x4, scoped, tag = 'scoped memory for tpu_custom_call.1']
    %8 = vsyncpa [#allocation3], 0
    // Predicated region
    $region2: #{tpu_custom_call.1} parent=1 // pred_check
      _
    $region3: #{tpu_custom_call.1} parent=1 // pred_check_branch
      %10 = sbr.rel (0) target = $region5
    $region4: #{tpu_custom_call.1} parent=1 // pred_region
      %s12 = ssub.s32 256, 256
      %13 = vsyncadd [#allocation3], %s12
      %s14 = sshll.u32 [#allocation2], 4
      %s15 = int_to_ptr.vmem [resolvable:$true] %s14
      %20 = dma.hbm_to_vmem [thread:$0]  %s0, 256, %s15, [#allocation3], 128, 128, 8
    $region5: #{tpu_custom_call.1} parent=1 // pred_fallthru
      _
    // Predicated region
    $region6: #{tpu_custom_call.1} parent=1 // pred_check
      _
    $region7: #{tpu_custom_call.1} parent=1 // pred_check_branch
      %22 = sbr.rel (0) target = $region9
    $region8: #{tpu_custom_call.1} parent=1 // pred_region
      %23 = dma.done [#allocation3], 256
    $region9: #{tpu_custom_call.1} parent=1 // pred_fallthru
      _
    %p24 = scmp.eq.s32.totalorder 0, 0
    %p25 = scmp.eq.s32.totalorder 0, 0
    %p26 = pnand %p24, %p25
    %p27 = pneg %p26
    // Predicated region
    $region10: #{tpu_custom_call.1} parent=1 // pred_check
      _
    $region11: #{tpu_custom_call.1} parent=1 // pred_check_branch
      %29 = sbr.rel (%p26) target = $region13
    $region12: #{tpu_custom_call.1} parent=1 // pred_region
      %vm30 = vcmask 3072
      %31 = vst.msk [vmem:[%s1] sm:$0xf] %vm30, 0.0
      %32 = vst.msk [vmem:[%s2] sm:$0xf] %vm30, 0.0
    $region13: #{tpu_custom_call.1} parent=1 // pred_fallthru
      _
    %v33 = vld [vmem:[#allocation2] sm:$0xff]
    %v34 = vld [vmem:[#allocation2 + $0x8] sm:$0xff]
    %v37 = vcombine.high %v33, %v33
    %v38 = vcombine.high %v34, %v34
    %vm41 = vcmask 1043456
    %v42 = vsel %vm41, %v33, 0.0
    %v43 = vsel %vm41, %v34, 0.0
    %v44 = vadd.f32 %v42, %v43
    %v45 = vsel %vm41, %v37, 0.0
    %v46 = vsel %vm41, %v38, 0.0
    %v47 = vadd.f32 %v45, %v46
    %v48 = vmul.f32 %v33, %v33
    %v49 = vmul.f32 %v34, %v34
    %v52 = vcombine.high %v48, %v48
    %v53 = vcombine.high %v49, %v49
    %v56 = vsel %vm41, %v48, 0.0
    %v57 = vsel %vm41, %v49, 0.0
    %v58 = vadd.f32 %v56, %v57
    %v59 = vsel %vm41, %v52, 0.0
    %v60 = vsel %vm41, %v53, 0.0
    %v61 = vadd.f32 %v59, %v60
    %v62 = vld [vmem:[%s1] sm:$0xf]
    %v63 = vsel %vm41, %v44, 0.0
    %v64 = vsel %vm41, %v47, 0.0
    %v65 = vadd.f32 %v63, %v64
    %66 = vadd.xlane.f32.xlu0 %v65
    %v67 = vpop.xlane.xlu0 %66
    %v68 = vadd.f32 %v62, %v67
    %vm69 = vcmask 3072
    %70 = vst.msk [vmem:[%s1] sm:$0xf] %vm69, %v68
    %v71 = vld [vmem:[%s2] sm:$0xf]
    %v72 = vsel %vm41, %v58, 0.0
    %v73 = vsel %vm41, %v61, 0.0
    %v74 = vadd.f32 %v72, %v73
    %75 = vadd.xlane.f32.xlu0 %v74
    %v76 = vpop.xlane.xlu0 %75
    %v77 = vadd.f32 %v71, %v76
    %78 = vst.msk [vmem:[%s2] sm:$0xf] %vm69, %v77
    // Predicated region
    $region14: #{tpu_custom_call.1} parent=1 // pred_check
      _
    $region15: #{tpu_custom_call.1} parent=1 // pred_check_branch
      %80 = sbr.rel (0) target = $region17
    $region16: #{tpu_custom_call.1} parent=1 // pred_region
      _
    $region17: #{tpu_custom_call.1} parent=1 // pred_fallthru
      _
    // Predicated region
    $region18: #{tpu_custom_call.1} parent=1 // pred_check
      _
    $region19: #{tpu_custom_call.1} parent=1 // pred_check_branch
      %82 = sbr.rel (0) target = $region21
    $region20: #{tpu_custom_call.1} parent=1 // pred_region
      _
    $region21: #{tpu_custom_call.1} parent=1 // pred_fallthru
      _
    // Predicated region
    $region22: #{tpu_custom_call.1} parent=1 // pred_check
      _
    $region23: #{tpu_custom_call.1} parent=1 // pred_check_branch
      %84 = sbr.rel (0) target = $region25
    $region24: #{tpu_custom_call.1} parent=1 // pred_region
      _
    $region25: #{tpu_custom_call.1} parent=1 // pred_fallthru
      _
    // Predicated region
    $region26: #{tpu_custom_call.1} parent=1 // pred_check
      _
    $region27: #{tpu_custom_call.1} parent=1 // pred_check_branch
      %86 = sbr.rel (0) target = $region29
    $region28: #{tpu_custom_call.1} parent=1 // pred_region
      _
    $region29: #{tpu_custom_call.1} parent=1 // pred_fallthru
      _
    %87 = vsyncpa [#allocation3], 1

</llo_original>
